<compile_context>
chip_gen: v6e
topology: v6e:2x2x1
jax: 0.10.0
libtpu: 0.0.40
codegen_flags: <defaults>
</compile_context>

<pallas_src>
import math

import jax
import jax.numpy as jnp
from jax import lax
from jax.experimental import pallas as pl
from jax.experimental.pallas import tpu as pltpu

# ---------------- config (small, consistent with a BERT layer) --------------
B = 2             # batch
S = 8             # sequence length
H = 32            # hidden_size
NH = 4            # num_attention_heads
HD = H // NH      # attention_head_size
FF = 4 * H        # intermediate_size
BS = B * S        # flattened rows
NS = NH * S       # head-major rows per batch
SEG = 128         # lane-aligned segment width inside the weight slab
LN_EPS = 1e-12
INV_SQRT_HD = 1.0 / math.sqrt(HD)
MASK_NEG = -1e9   # cross-head block mask (exp(-1e9 - m) == 0 in f32)


def _layer_norm(x, gamma, beta):
    # x: (S, H); gamma/beta: (1, H)
    mean = jnp.mean(x, axis=-1, keepdims=True)
    var = jnp.mean(jnp.square(x - mean), axis=-1, keepdims=True)
    return (x - mean) * lax.rsqrt(var + LN_EPS) * gamma + beta


def _gelu(x):
    return x * 0.5 * (1.0 + lax.erf(x * (1.0 / math.sqrt(2.0))))


def bert_layer_kernel(x_ref, mask_ref, w1_ref, wout_ref, vec_ref, o_ref):
    """One batch element per grid step; weights stay VMEM-resident.

    w1_ref lanes: [0:3H]=wqkv, [SEG:SEG+H]=wo, [2*SEG:2*SEG+FF]=wi.
    vec_ref rows: 0=bqkv, 1=bo, 2=ln1_gamma, 3=ln1_beta, 4=bi, 5=bout,
                  6=ln2_gamma, 7=ln2_beta.
    """
    x = x_ref[...]                                   # (S, H)
    mask = mask_ref[0]                               # (NS, NS) additive mask

    wqkv = w1_ref[:, 0:3 * H]                        # (H, 3H)
    wo = w1_ref[:, SEG:SEG + H]                      # (H, H)
    wi = w1_ref[:, 2 * SEG:2 * SEG + FF]             # (H, FF)

    bqkv = vec_ref[0:1, 0:3 * H]
    bo = vec_ref[1:2, 0:H]
    g1 = vec_ref[2:3, 0:H]
    be1 = vec_ref[3:4, 0:H]
    bi = vec_ref[4:5, 0:FF]
    bout = vec_ref[5:6, 0:H]
    g2 = vec_ref[6:7, 0:H]
    be2 = vec_ref[7:8, 0:H]

    # --- fused Q|K|V projection: one full-width MXU push -------------------
    qkv = jnp.dot(x, wqkv, preferred_element_type=jnp.float32) + bqkv   # (S, 3H)

    # --- relayout to head-major rows: (S, H) -> (NH*S, HD) -----------------
    def heads(t):
        return jnp.concatenate(
            [t[:, h * HD:(h + 1) * HD] for h in range(NH)], axis=0)

    q_f = heads(qkv[:, 0:H])                         # (NS, HD)
    k_f = heads(qkv[:, H:2 * H])                     # (NS, HD)
    v_f = heads(qkv[:, 2 * H:3 * H])                 # (NS, HD)

    # --- all heads in ONE score matmul + ONE softmax ------------------------
    scores = lax.dot_general(
        q_f, k_f, (((1,), (1,)), ((), ())),
        preferred_element_type=jnp.float32) * INV_SQRT_HD + mask         # (NS, NS)

    m = jnp.max(scores, axis=-1, keepdims=True)
    e = jnp.exp(scores - m)
    denom = jnp.sum(e, axis=-1, keepdims=True)
    probs = e * pl.reciprocal(denom, approx=True)    # softmax (dropout = id)

    ctx_f = jnp.dot(probs, v_f, preferred_element_type=jnp.float32)      # (NS, HD)
    ctx = jnp.concatenate(
        [ctx_f[h * S:(h + 1) * S, :] for h in range(NH)], axis=1)        # (S, H)

    # --- BertSelfOutput: Wo matmul + residual + LayerNorm -------------------
    attn_proj = jnp.dot(ctx, wo, preferred_element_type=jnp.float32) + bo
    attn_out = _layer_norm(attn_proj + x, g1, be1)

    # --- intermediate: dense + gelu ------------------------------------------
    inter = _gelu(jnp.dot(attn_out, wi, preferred_element_type=jnp.float32) + bi)

    # --- BertOutput: dense + residual + LayerNorm ----------------------------
    out = jnp.dot(inter, wout_ref[...], preferred_element_type=jnp.float32) + bout
    o_ref[...] = _layer_norm(out + attn_out, g2, be2)


def pack_params(p):
    """One-time parameter packing (call OUTSIDE the per-step path)."""
    w1 = jnp.zeros((H, 3 * SEG), jnp.float32)
    w1 = w1.at[:, 0:3 * H].set(
        jnp.concatenate([p["wq"], p["wk"], p["wv"]], axis=1))
    w1 = w1.at[:, SEG:SEG + H].set(p["wo"])
    w1 = w1.at[:, 2 * SEG:2 * SEG + FF].set(p["wi"])

    vec = jnp.zeros((8, SEG), jnp.float32)
    vec = vec.at[0, 0:3 * H].set(
        jnp.concatenate([p["bq"], p["bk"], p["bv"]], axis=1)[0])
    vec = vec.at[1, 0:H].set(p["bo"][0])
    vec = vec.at[2, 0:H].set(p["g1"][0])
    vec = vec.at[3, 0:H].set(p["be1"][0])
    vec = vec.at[4, 0:FF].set(p["bi"][0])
    vec = vec.at[5, 0:H].set(p["bout"][0])
    vec = vec.at[6, 0:H].set(p["g2"][0])
    vec = vec.at[7, 0:H].set(p["be2"][0])

    return {"w1": w1, "wout": p["wout"], "vec": vec}


@jax.jit
def quant_bert_layer(x, attention_mask, packed):
    """x: (B, S, H) f32; attention_mask: (B, 1, 1, S) additive f32."""
    x2d = x.reshape(BS, H)

    # Per-batch head-block-diagonal additive mask (B, NS, NS):
    # within-head entries carry the additive attention mask of the key
    # position; cross-head entries get a large negative so the single
    # (NS, NS) softmax factors exactly into per-head softmaxes.
    am = attention_mask[:, 0, 0, :]                           # (B, S)
    head_row = jnp.arange(NS) // S                            # (NS,)
    same_head = head_row[:, None] == head_row[None, :]        # (NS, NS)
    am_cols = jnp.tile(am, (1, NH))                           # (B, NS)
    mask3d = jnp.where(same_head[None, :, :], am_cols[:, None, :],
                       jnp.float32(MASK_NEG)).astype(jnp.float32)  # (B, NS, NS)

    grid_spec = pltpu.PrefetchScalarGridSpec(
        num_scalar_prefetch=0,
        grid=(B,),
        in_specs=[
            pl.BlockSpec((S, H), lambda b: (b, 0)),            # activations
            pl.BlockSpec((1, NS, NS), lambda b: (b, 0, 0)),    # per-batch mask
            pl.BlockSpec((H, 3 * SEG), lambda b: (0, 0)),      # weight slab
            pl.BlockSpec((FF, H), lambda b: (0, 0)),           # wout
            pl.BlockSpec((8, SEG), lambda b: (0, 0)),          # bias/LN slab
        ],
        out_specs=pl.BlockSpec((S, H), lambda b: (b, 0)),
    )

    out2d = pl.pallas_call(
        bert_layer_kernel,
        out_shape=jax.ShapeDtypeStruct((BS, H), jnp.float32),
        grid_spec=grid_spec,
        compiler_params=pltpu.CompilerParams(
            dimension_semantics=("parallel",)),
        cost_estimate=pl.CostEstimate(
            flops=460_000, transcendentals=5_000, bytes_accessed=75_000),
    )(x2d, mask3d, packed["w1"], packed["wout"], packed["vec"])

    return out2d.reshape(B, S, H)


# --------------------------- pure-JAX reference -----------------------------
def reference(x, attention_mask, p):
    def ln(y, g, b):
        mu = jnp.mean(y, -1, keepdims=True)
        var = jnp.mean((y - mu) ** 2, -1, keepdims=True)
        return (y - mu) / jnp.sqrt(var + LN_EPS) * g + b

    q = x @ p["wq"] + p["bq"]
    k = x @ p["wk"] + p["bk"]
    v = x @ p["wv"] + p["bv"]

    def split(t):  # (B,S,H) -> (B,NH,S,HD)
        return t.reshape(B, S, NH, HD).transpose(0, 2, 1, 3)

    qh, kh, vh = split(q), split(k), split(v)
    scores = jnp.einsum("bnqd,bnkd->bnqk", qh, kh) * INV_SQRT_HD
    scores = scores + attention_mask          # (B,1,1,S) broadcast
    probs = jax.nn.softmax(scores, axis=-1)
    ctx = jnp.einsum("bnqk,bnkd->bnqd", probs, vh)
    ctx = ctx.transpose(0, 2, 1, 3).reshape(B, S, H)
    attn = ln(ctx @ p["wo"] + p["bo"] + x, p["g1"], p["be1"])
    inter = attn @ p["wi"] + p["bi"]
    inter = inter * 0.5 * (1.0 + lax.erf(inter / math.sqrt(2.0)))
    out = inter @ p["wout"] + p["bout"]
    return ln(out + attn, p["g2"], p["be2"])


# --------------------------------- main --------------------------------------
if __name__ == "__main__":
    key = jax.random.PRNGKey(0)
    keys = jax.random.split(key, 16)

    def init(k, shape, scale=0.02):
        return (scale * jax.random.normal(k, shape)).astype(jnp.float32)

    params = {
        "wq": init(keys[0], (H, H)),   "bq": init(keys[1], (1, H)),
        "wk": init(keys[2], (H, H)),   "bk": init(keys[3], (1, H)),
        "wv": init(keys[4], (H, H)),   "bv": init(keys[5], (1, H)),
        "wo": init(keys[6], (H, H)),   "bo": init(keys[7], (1, H)),
        "g1": jnp.ones((1, H), jnp.float32), "be1": jnp.zeros((1, H), jnp.float32),
        "wi": init(keys[8], (H, FF)),  "bi": init(keys[9], (1, FF)),
        "wout": init(keys[10], (FF, H)), "bout": init(keys[11], (1, H)),
        "g2": jnp.ones((1, H), jnp.float32), "be2": jnp.zeros((1, H), jnp.float32),
    }

    # One-time parameter packing, hoisted out of the per-call path.
    packed = jax.tree.map(jax.block_until_ready, pack_params(params))

    x = jax.random.normal(keys[12], (B, S, H), jnp.float32)
    # additive attention mask: last 2 key positions of batch 1 masked out
    mask = jnp.zeros((B, 1, 1, S), jnp.float32)
    mask = mask.at[1, 0, 0, -2:].set(-10000.0)

    out = jax.block_until_ready(quant_bert_layer(x, mask, packed))
    ref = reference(x, mask, params)

    assert out.shape == (B, S, H)
    max_err = float(jnp.max(jnp.abs(out - ref)))
    # 2e-3 tolerance allows the approx EUP reciprocal in softmax; everything
    # else is exact f32.
    assert jnp.allclose(out, ref, rtol=2e-3, atol=2e-3), f"max err {max_err}"

    print("KERNEL_OK")
</pallas_src>

<mosaic_0001>
module attributes {stable_mosaic.version = 11 : i64} {
  func.func @bert_layer_kernel(%arg0: i32, %arg1: memref<8x32xf32, #tpu.memory_space<vmem>>, %arg2: memref<1x32x32xf32, #tpu.memory_space<vmem>>, %arg3: memref<32x384xf32, #tpu.memory_space<vmem>>, %arg4: memref<128x32xf32, #tpu.memory_space<vmem>>, %arg5: memref<8x128xf32, #tpu.memory_space<vmem>>, %arg6: memref<8x32xf32, #tpu.memory_space<vmem>>) attributes {dimension_semantics = [#tpu.dimension_semantics<parallel>], iteration_bounds = array<i64: 2>, scalar_prefetch = 0 : i64, scratch_operands = 0 : i64, tpu.core_type = #tpu.core_type<tc>, window_params = [{transform_indices = @transform_0, window_bounds = array<i64: 8, 32>}, {transform_indices = @transform_1, window_bounds = array<i64: 1, 32, 32>}, {pipeline_mode = #tpu.pipeline_mode<synchronous>, transform_indices = @transform_2, window_bounds = array<i64: 32, 384>}, {pipeline_mode = #tpu.pipeline_mode<synchronous>, transform_indices = @transform_3, window_bounds = array<i64: 128, 32>}, {pipeline_mode = #tpu.pipeline_mode<synchronous>, transform_indices = @transform_4, window_bounds = array<i64: 8, 128>}, {transform_indices = @transform_5, window_bounds = array<i64: 8, 32>}]} {
    %c0 = arith.constant 0 : index
    %c0_0 = arith.constant 0 : index
    %0 = vector.load %arg1[%c0, %c0_0] : memref<8x32xf32, #tpu.memory_space<vmem>>, vector<8x32xf32>
    %c0_1 = arith.constant 0 : index
    %c0_2 = arith.constant 0 : index
    %c0_3 = arith.constant 0 : index
    %1 = vector.load %arg2[%c0_1, %c0_2, %c0_3] : memref<1x32x32xf32, #tpu.memory_space<vmem>>, vector<1x32x32xf32>
    %2 = vector.shape_cast %1 : vector<1x32x32xf32> to vector<32x32xf32>
    %c0_4 = arith.constant 0 : index
    %c0_5 = arith.constant 0 : index
    %3 = vector.load %arg3[%c0_4, %c0_5] : memref<32x384xf32, #tpu.memory_space<vmem>>, vector<32x96xf32>
    %c0_6 = arith.constant 0 : index
    %c128 = arith.constant 128 : index
    %4 = vector.load %arg3[%c0_6, %c128] : memref<32x384xf32, #tpu.memory_space<vmem>>, vector<32x32xf32>
    %c0_7 = arith.constant 0 : index
    %c256 = arith.constant 256 : index
    %5 = vector.load %arg3[%c0_7, %c256] : memref<32x384xf32, #tpu.memory_space<vmem>>, vector<32x128xf32>
    %c0_8 = arith.constant 0 : index
    %c0_9 = arith.constant 0 : index
    %6 = vector.load %arg5[%c0_8, %c0_9] : memref<8x128xf32, #tpu.memory_space<vmem>>, vector<1x96xf32>
    %c1 = arith.constant 1 : index
    %c0_10 = arith.constant 0 : index
    %7 = vector.load %arg5[%c1, %c0_10] : memref<8x128xf32, #tpu.memory_space<vmem>>, vector<1x32xf32>
    %c2 = arith.constant 2 : index
    %c0_11 = arith.constant 0 : index
    %8 = vector.load %arg5[%c2, %c0_11] : memref<8x128xf32, #tpu.memory_space<vmem>>, vector<1x32xf32>
    %c3 = arith.constant 3 : index
    %c0_12 = arith.constant 0 : index
    %9 = vector.load %arg5[%c3, %c0_12] : memref<8x128xf32, #tpu.memory_space<vmem>>, vector<1x32xf32>
    %c4 = arith.constant 4 : index
    %c0_13 = arith.constant 0 : index
    %10 = vector.load %arg5[%c4, %c0_13] : memref<8x128xf32, #tpu.memory_space<vmem>>, vector<1x128xf32>
    %c5 = arith.constant 5 : index
    %c0_14 = arith.constant 0 : index
    %11 = vector.load %arg5[%c5, %c0_14] : memref<8x128xf32, #tpu.memory_space<vmem>>, vector<1x32xf32>
    %c6 = arith.constant 6 : index
    %c0_15 = arith.constant 0 : index
    %12 = vector.load %arg5[%c6, %c0_15] : memref<8x128xf32, #tpu.memory_space<vmem>>, vector<1x32xf32>
    %c7 = arith.constant 7 : index
    %c0_16 = arith.constant 0 : index
    %13 = vector.load %arg5[%c7, %c0_16] : memref<8x128xf32, #tpu.memory_space<vmem>>, vector<1x32xf32>
    %cst = arith.constant dense<0.000000e+00> : vector<8x96xf32>
    %14 = tpu.matmul %0, %3, %cst {dimension_numbers = #tpu.dot_dimension_numbers<[1], [0], [0], [1], [0, 0, 1, 1], [], []>} : vector<8x32xf32>, vector<32x96xf32>, vector<8x96xf32> -> vector<8x96xf32>
    %15 = vector.broadcast %6 : vector<1x96xf32> to vector<8x96xf32>
    %16 = arith.addf %14, %15 : vector<8x96xf32>
    %17 = vector.extract_strided_slice %16 {offsets = [0, 0], sizes = [8, 32], strides = [1, 1]} : vector<8x96xf32> to vector<8x32xf32>
    %18 = vector.extract_strided_slice %17 {offsets = [0, 0], sizes = [8, 8], strides = [1, 1]} : vector<8x32xf32> to vector<8x8xf32>
    %19 = vector.extract_strided_slice %17 {offsets = [0, 8], sizes = [8, 8], strides = [1, 1]} : vector<8x32xf32> to vector<8x8xf32>
    %20 = vector.extract_strided_slice %17 {offsets = [0, 16], sizes = [8, 8], strides = [1, 1]} : vector<8x32xf32> to vector<8x8xf32>
    %21 = vector.extract_strided_slice %17 {offsets = [0, 24], sizes = [8, 8], strides = [1, 1]} : vector<8x32xf32> to vector<8x8xf32>
    %22 = tpu.concatenate %18, %19, %20, %21 in 0 : vector<8x8xf32>, vector<8x8xf32>, vector<8x8xf32>, vector<8x8xf32> -> vector<32x8xf32>
    %23 = vector.extract_strided_slice %16 {offsets = [0, 32], sizes = [8, 32], strides = [1, 1]} : vector<8x96xf32> to vector<8x32xf32>
    %24 = vector.extract_strided_slice %23 {offsets = [0, 0], sizes = [8, 8], strides = [1, 1]} : vector<8x32xf32> to vector<8x8xf32>
    %25 = vector.extract_strided_slice %23 {offsets = [0, 8], sizes = [8, 8], strides = [1, 1]} : vector<8x32xf32> to vector<8x8xf32>
    %26 = vector.extract_strided_slice %23 {offsets = [0, 16], sizes = [8, 8], strides = [1, 1]} : vector<8x32xf32> to vector<8x8xf32>
    %27 = vector.extract_strided_slice %23 {offsets = [0, 24], sizes = [8, 8], strides = [1, 1]} : vector<8x32xf32> to vector<8x8xf32>
    %28 = tpu.concatenate %24, %25, %26, %27 in 0 : vector<8x8xf32>, vector<8x8xf32>, vector<8x8xf32>, vector<8x8xf32> -> vector<32x8xf32>
    %29 = vector.extract_strided_slice %16 {offsets = [0, 64], sizes = [8, 32], strides = [1, 1]} : vector<8x96xf32> to vector<8x32xf32>
    %30 = vector.extract_strided_slice %29 {offsets = [0, 0], sizes = [8, 8], strides = [1, 1]} : vector<8x32xf32> to vector<8x8xf32>
    %31 = vector.extract_strided_slice %29 {offsets = [0, 8], sizes = [8, 8], strides = [1, 1]} : vector<8x32xf32> to vector<8x8xf32>
    %32 = vector.extract_strided_slice %29 {offsets = [0, 16], sizes = [8, 8], strides = [1, 1]} : vector<8x32xf32> to vector<8x8xf32>
    %33 = vector.extract_strided_slice %29 {offsets = [0, 24], sizes = [8, 8], strides = [1, 1]} : vector<8x32xf32> to vector<8x8xf32>
    %34 = tpu.concatenate %30, %31, %32, %33 in 0 : vector<8x8xf32>, vector<8x8xf32>, vector<8x8xf32>, vector<8x8xf32> -> vector<32x8xf32>
    %cst_17 = arith.constant dense<0.000000e+00> : vector<32x32xf32>
    %35 = tpu.matmul %22, %28, %cst_17 {dimension_numbers = #tpu.dot_dimension_numbers<[1], [1], [0], [0], [0, 0, 1, 0], [], []>} : vector<32x8xf32>, vector<32x8xf32>, vector<32x32xf32> -> vector<32x32xf32>
    %cst_18 = arith.constant 0.353553385 : f32
    %36 = vector.broadcast %cst_18 : f32 to vector<32x32xf32>
    %37 = arith.mulf %35, %36 : vector<32x32xf32>
    %38 = arith.addf %37, %2 : vector<32x32xf32>
    %cst_19 = arith.constant dense<0xFF800000> : vector<32xf32>
    %39 = vector.multi_reduction <maximumf>, %38, %cst_19 [1] : vector<32x32xf32> to vector<32xf32>
    %40 = vector.shape_cast %39 : vector<32xf32> to vector<32x1xf32>
    %41 = vector.broadcast %40 : vector<32x1xf32> to vector<32x32xf32>
    %42 = arith.subf %38, %41 : vector<32x32xf32>
    %43 = math.exp %42 : vector<32x32xf32>
    %cst_20 = arith.constant dense<0.000000e+00> : vector<32xf32>
    %44 = vector.multi_reduction <add>, %43, %cst_20 [1] : vector<32x32xf32> to vector<32xf32>
    %45 = vector.shape_cast %44 : vector<32xf32> to vector<32x1xf32>
    %46 = tpu.reciprocal %45 {approx = true} : vector<32x1xf32> -> vector<32x1xf32>
    %47 = vector.broadcast %46 : vector<32x1xf32> to vector<32x32xf32>
    %48 = arith.mulf %43, %47 : vector<32x32xf32>
    %cst_21 = arith.constant dense<0.000000e+00> : vector<32x8xf32>
    %49 = tpu.matmul %48, %34, %cst_21 {dimension_numbers = #tpu.dot_dimension_numbers<[1], [0], [0], [1], [0, 0, 1, 1], [], []>} : vector<32x32xf32>, vector<32x8xf32>, vector<32x8xf32> -> vector<32x8xf32>
    %50 = vector.extract_strided_slice %49 {offsets = [0, 0], sizes = [8, 8], strides = [1, 1]} : vector<32x8xf32> to vector<8x8xf32>
    %51 = vector.extract_strided_slice %49 {offsets = [8, 0], sizes = [8, 8], strides = [1, 1]} : vector<32x8xf32> to vector<8x8xf32>
    %52 = vector.extract_strided_slice %49 {offsets = [16, 0], sizes = [8, 8], strides = [1, 1]} : vector<32x8xf32> to vector<8x8xf32>
    %53 = vector.extract_strided_slice %49 {offsets = [24, 0], sizes = [8, 8], strides = [1, 1]} : vector<32x8xf32> to vector<8x8xf32>
    %54 = tpu.concatenate %50, %51, %52, %53 in 1 : vector<8x8xf32>, vector<8x8xf32>, vector<8x8xf32>, vector<8x8xf32> -> vector<8x32xf32>
    %cst_22 = arith.constant dense<0.000000e+00> : vector<8x32xf32>
    %55 = tpu.matmul %54, %4, %cst_22 {dimension_numbers = #tpu.dot_dimension_numbers<[1], [0], [0], [1], [0, 0, 1, 1], [], []>} : vector<8x32xf32>, vector<32x32xf32>, vector<8x32xf32> -> vector<8x32xf32>
    %56 = vector.broadcast %7 : vector<1x32xf32> to vector<8x32xf32>
    %57 = arith.addf %55, %56 : vector<8x32xf32>
    %58 = arith.addf %57, %0 : vector<8x32xf32>
    %cst_23 = arith.constant dense<0.000000e+00> : vector<8xf32>
    %59 = vector.multi_reduction <add>, %58, %cst_23 [1] : vector<8x32xf32> to vector<8xf32>
    %60 = vector.shape_cast %59 : vector<8xf32> to vector<8x1xf32>
    %cst_24 = arith.constant 3.200000e+01 : f32
    %61 = vector.broadcast %cst_24 : f32 to vector<8x1xf32>
    %62 = arith.divf %60, %61 : vector<8x1xf32>
    %63 = vector.broadcast %62 : vector<8x1xf32> to vector<8x32xf32>
    %64 = arith.subf %58, %63 : vector<8x32xf32>
    %65 = arith.mulf %64, %64 : vector<8x32xf32>
    %cst_25 = arith.constant dense<0.000000e+00> : vector<8xf32>
    %66 = vector.multi_reduction <add>, %65, %cst_25 [1] : vector<8x32xf32> to vector<8xf32>
    %67 = vector.shape_cast %66 : vector<8xf32> to vector<8x1xf32>
    %cst_26 = arith.constant 3.200000e+01 : f32
    %68 = vector.broadcast %cst_26 : f32 to vector<8x1xf32>
    %69 = arith.divf %67, %68 : vector<8x1xf32>
    %70 = vector.broadcast %62 : vector<8x1xf32> to vector<8x32xf32>
    %71 = arith.subf %58, %70 : vector<8x32xf32>
    %cst_27 = arith.constant 9.99999996E-13 : f32
    %72 = vector.broadcast %cst_27 : f32 to vector<8x1xf32>
    %73 = arith.addf %69, %72 : vector<8x1xf32>
    %74 = math.rsqrt %73 : vector<8x1xf32>
    %75 = vector.broadcast %74 : vector<8x1xf32> to vector<8x32xf32>
    %76 = arith.mulf %71, %75 : vector<8x32xf32>
    %77 = vector.broadcast %8 : vector<1x32xf32> to vector<8x32xf32>
    %78 = arith.mulf %76, %77 : vector<8x32xf32>
    %79 = vector.broadcast %9 : vector<1x32xf32> to vector<8x32xf32>
    %80 = arith.addf %78, %79 : vector<8x32xf32>
    %cst_28 = arith.constant dense<0.000000e+00> : vector<8x128xf32>
    %81 = tpu.matmul %80, %5, %cst_28 {dimension_numbers = #tpu.dot_dimension_numbers<[1], [0], [0], [1], [0, 0, 1, 1], [], []>} : vector<8x32xf32>, vector<32x128xf32>, vector<8x128xf32> -> vector<8x128xf32>
    %82 = vector.broadcast %10 : vector<1x128xf32> to vector<8x128xf32>
    %83 = arith.addf %81, %82 : vector<8x128xf32>
    %cst_29 = arith.constant 5.000000e-01 : f32
    %84 = vector.broadcast %cst_29 : f32 to vector<8x128xf32>
    %85 = arith.mulf %83, %84 : vector<8x128xf32>
    %cst_30 = arith.constant 0.707106769 : f32
    %86 = vector.broadcast %cst_30 : f32 to vector<8x128xf32>
    %87 = arith.mulf %83, %86 : vector<8x128xf32>
    %88 = math.erf %87 : vector<8x128xf32>
    %cst_31 = arith.constant 1.000000e+00 : f32
    %89 = vector.broadcast %cst_31 : f32 to vector<8x128xf32>
    %90 = arith.addf %89, %88 : vector<8x128xf32>
    %91 = arith.mulf %85, %90 : vector<8x128xf32>
    %c0_32 = arith.constant 0 : index
    %c0_33 = arith.constant 0 : index
    %92 = vector.load %arg4[%c0_32, %c0_33] : memref<128x32xf32, #tpu.memory_space<vmem>>, vector<128x32xf32>
    %cst_34 = arith.constant dense<0.000000e+00> : vector<8x32xf32>
    %93 = tpu.matmul %91, %92, %cst_34 {dimension_numbers = #tpu.dot_dimension_numbers<[1], [0], [0], [1], [0, 0, 1, 1], [], []>} : vector<8x128xf32>, vector<128x32xf32>, vector<8x32xf32> -> vector<8x32xf32>
    %94 = vector.broadcast %11 : vector<1x32xf32> to vector<8x32xf32>
    %95 = arith.addf %93, %94 : vector<8x32xf32>
    %96 = arith.addf %95, %80 : vector<8x32xf32>
    %cst_35 = arith.constant dense<0.000000e+00> : vector<8xf32>
    %97 = vector.multi_reduction <add>, %96, %cst_35 [1] : vector<8x32xf32> to vector<8xf32>
    %98 = vector.shape_cast %97 : vector<8xf32> to vector<8x1xf32>
    %cst_36 = arith.constant 3.200000e+01 : f32
    %99 = vector.broadcast %cst_36 : f32 to vector<8x1xf32>
    %100 = arith.divf %98, %99 : vector<8x1xf32>
    %101 = vector.broadcast %100 : vector<8x1xf32> to vector<8x32xf32>
    %102 = arith.subf %96, %101 : vector<8x32xf32>
    %103 = arith.mulf %102, %102 : vector<8x32xf32>
    %cst_37 = arith.constant dense<0.000000e+00> : vector<8xf32>
    %104 = vector.multi_reduction <add>, %103, %cst_37 [1] : vector<8x32xf32> to vector<8xf32>
    %105 = vector.shape_cast %104 : vector<8xf32> to vector<8x1xf32>
    %cst_38 = arith.constant 3.200000e+01 : f32
    %106 = vector.broadcast %cst_38 : f32 to vector<8x1xf32>
    %107 = arith.divf %105, %106 : vector<8x1xf32>
    %108 = vector.broadcast %100 : vector<8x1xf32> to vector<8x32xf32>
    %109 = arith.subf %96, %108 : vector<8x32xf32>
    %cst_39 = arith.constant 9.99999996E-13 : f32
    %110 = vector.broadcast %cst_39 : f32 to vector<8x1xf32>
    %111 = arith.addf %107, %110 : vector<8x1xf32>
    %112 = math.rsqrt %111 : vector<8x1xf32>
    %113 = vector.broadcast %112 : vector<8x1xf32> to vector<8x32xf32>
    %114 = arith.mulf %109, %113 : vector<8x32xf32>
    %115 = vector.broadcast %12 : vector<1x32xf32> to vector<8x32xf32>
    %116 = arith.mulf %114, %115 : vector<8x32xf32>
    %117 = vector.broadcast %13 : vector<1x32xf32> to vector<8x32xf32>
    %118 = arith.addf %116, %117 : vector<8x32xf32>
    %c0_40 = arith.constant 0 : index
    %c0_41 = arith.constant 0 : index
    %119 = vector.load %arg6[%c0_40, %c0_41] : memref<8x32xf32, #tpu.memory_space<vmem>>, vector<8x32xf32>
    tpu.vector_store %arg6[%c0_40, %c0_41], %118 {strides = array<i32>} : memref<8x32xf32, #tpu.memory_space<vmem>>, vector<8x32xf32>,
    return
  }
  func.func @transform_0(%arg0: i32) -> (i32, i32) {
    %c0_i32 = arith.constant 0 : i32
    %c0_i32_0 = arith.constant 0 : i32
    return %arg0, %c0_i32 : i32, i32
  }
  func.func @transform_1(%arg0: i32) -> (i32, i32, i32) {
    %c0_i32 = arith.constant 0 : i32
    %c0_i32_0 = arith.constant 0 : i32
    %c0_i32_1 = arith.constant 0 : i32
    return %arg0, %c0_i32, %c0_i32_0 : i32, i32, i32
  }
  func.func @transform_2(%arg0: i32) -> (i32, i32) {
    %c0_i32 = arith.constant 0 : i32
    %c0_i32_0 = arith.constant 0 : i32
    %c0_i32_1 = arith.constant 0 : i32
    return %c0_i32, %c0_i32_0 : i32, i32
  }
  func.func @transform_3(%arg0: i32) -> (i32, i32) {
    %c0_i32 = arith.constant 0 : i32
    %c0_i32_0 = arith.constant 0 : i32
    %c0_i32_1 = arith.constant 0 : i32
    return %c0_i32, %c0_i32_0 : i32, i32
  }
  func.func @transform_4(%arg0: i32) -> (i32, i32) {
    %c0_i32 = arith.constant 0 : i32
    %c0_i32_0 = arith.constant 0 : i32
    %c0_i32_1 = arith.constant 0 : i32
    return %c0_i32, %c0_i32_0 : i32, i32
  }
  func.func @transform_5(%arg0: i32) -> (i32, i32) {
    %c0_i32 = arith.constant 0 : i32
    %c0_i32_0 = arith.constant 0 : i32
    return %arg0, %c0_i32 : i32, i32
  }
}

</mosaic_0001>

<llo_original>
// kernel: quant_bert_layer.1
$region0: #{quant_bert_layer.1}
  #allocation0 [shape = 'u32[]', space=smem, size = 0x4, offset = 0x4, fixed_abs, tag = 'smem constant byte address 0x4 - core index']
  #allocation1 [shape = 'u32[144,128]{1,0:T(1,128)}', space=vmem, size = 0x12000, scoped, tag = 'internal scratch']
  %s0 = inlined_call_operand.vmem [shape: f32[16,32], index: 0, kind: input, shape index: {}]
  %s1 = inlined_call_operand.vmem [shape: f32[2,32,32], index: 1, kind: input, shape index: {}]
  %s2 = inlined_call_operand.vmem [shape: f32[32,384], index: 2, kind: input, shape index: {}]
  %s3 = inlined_call_operand.vmem [shape: f32[128,32], index: 3, kind: input, shape index: {}]
  %s4 = inlined_call_operand.vmem [shape: f32[8,128], index: 4, kind: input, shape index: {}]
  %s5 = inlined_call_operand.hbm [shape: f32[16,32], index: 5, kind: output, shape index: {}]
  %s6 = sld [smem:[#allocation0]]
  $region53: #{quant_bert_layer.1} parent=0
    _
  %s8 = ssub.s32 1, %s6
  %s9 = scalar_select 0, %s8, %s6
  $region1: #{quant_bert_layer.1} parent=0
    #allocation2 [shape = 'u8[8192]{0}', space=vmem, size = 0x2000, scoped, tag = 'output window, operand 0']
    #allocation3 [shape = 's32[2]{0}', space=sflag, size = 0x8, scoped, tag = 'scoped memory for quant_bert_layer.1']
    %10 = vsyncpa [#allocation3], 0
    %s11 = scalar_lea.sflag [#allocation3], 1
    %12 = vsyncpa %s11, 0
    loop: start=0, step=1, limit=4
    $region2: #{quant_bert_layer.1} parent=1 // loop_pre_header
      _
    $region3: #{quant_bert_layer.1} parent=1 // loop_header
      %s14 = sphi 0, %s18
      %p15 = scmp.ge.s32.totalorder %s14, 4
      %s24 = sphi 0, %s26
      %s27 = sphi 0, %s24
      %s28 = sphi 0, %s27
      %s44 = sphi 0, %s28
      %s50 = sphi 0, %s52
      %s53 = sphi 0, %s50
      %s54 = sphi 0, %s53
      %s70 = sphi 0, %s54
      %s74 = sphi 0, %s74
      %s76 = sphi 0, %s74
      %s77 = sphi 0, %s76
      %s91 = sphi 0, %s77
      %s95 = sphi 0, %s95
      %s97 = sphi 0, %s95
      %s98 = sphi 0, %s97
      %s112 = sphi 0, %s98
      %s116 = sphi 0, %s116
      %s118 = sphi 0, %s116
      %s119 = sphi 0, %s118
      %s133 = sphi 0, %s119
      %s139 = sphi 0, %s141
      %s142 = sphi 0, %s139
      %s143 = sphi 0, %s142
      %s159 = sphi 0, %s143
    $region4: #{quant_bert_layer.1} parent=1 // loop_header_branch
      %17 = sbr.rel (%p15) target = $region8
    $region5: #{quant_bert_layer.1} parent=1 // loop_body
      %s19 = ssub.s32 %s14, 1
      %s20 = ssub.s32 %s14, 2
      %s21 = sadd.s32 %s14, 1
      %s22 = ssub.s32 %s14, %s21
      %p23 = scmp.eq.s32.totalorder %s22, 0
      %s25 = sadd.s32 %s24, 1
      %s26 = scalar_select %p23, %s24, %s25
      %p29 = pneg %p23
      %p30 = scmp.eq.s32.totalorder %s14, 1
      %p31 = por %p29, %p30
      %p32 = scmp.ne.s32.totalorder %s24, %s27
      %p33 = scmp.eq.s32.totalorder %s14, 0
      %p34 = por %p32, %p33
      %p35 = scmp.ne.s32.totalorder %s24, %s27
      %p36 = scmp.eq.s32.totalorder %s19, 1
      %p37 = por %p35, %p36
      %p38 = scmp.ne.s32.totalorder %s27, %s28
      %p39 = scmp.eq.s32.totalorder %s19, 0
      %p40 = por %p38, %p39
      %p41 = scmp.ne.s32.totalorder %s27, %s28
      %p42 = scmp.eq.s32.totalorder %s20, 1
      %p43 = por %p41, %p42
      %p45 = scmp.ne.s32.totalorder %s28, %s44
      %p46 = scmp.eq.s32.totalorder %s20, 0
      %p47 = por %p45, %p46
      %s48 = ssub.s32 %s14, %s21
      %p49 = scmp.eq.s32.totalorder %s48, 0
      %s51 = sadd.s32 %s50, 1
      %s52 = scalar_select %p49, %s50, %s51
      %p55 = pneg %p49
      %p56 = scmp.eq.s32.totalorder %s14, 1
      %p57 = por %p55, %p56
      %p58 = scmp.ne.s32.totalorder %s50, %s53
      %p59 = scmp.eq.s32.totalorder %s14, 0
      %p60 = por %p58, %p59
      %p61 = scmp.ne.s32.totalorder %s50, %s53
      %p62 = scmp.eq.s32.totalorder %s19, 1
      %p63 = por %p61, %p62
      %p64 = scmp.ne.s32.totalorder %s53, %s54
      %p65 = scmp.eq.s32.totalorder %s19, 0
      %p66 = por %p64, %p65
      %p67 = scmp.ne.s32.totalorder %s53, %s54
      %p68 = scmp.eq.s32.totalorder %s20, 1
      %p69 = por %p67, %p68
      %p71 = scmp.ne.s32.totalorder %s54, %s70
      %p72 = scmp.eq.s32.totalorder %s20, 0
      %p73 = por %p71, %p72
      %s75 = sadd.s32 %s74, 1
      %p78 = scmp.eq.s32.totalorder %s14, 1
      %p79 = scmp.ne.s32.totalorder %s74, %s76
      %p80 = scmp.eq.s32.totalorder %s14, 0
      %p81 = por %p79, %p80
      %p82 = scmp.ne.s32.totalorder %s74, %s76
      %p83 = scmp.eq.s32.totalorder %s19, 1
      %p84 = por %p82, %p83
      %p85 = scmp.ne.s32.totalorder %s76, %s77
      %p86 = scmp.eq.s32.totalorder %s19, 0
      %p87 = por %p85, %p86
      %p88 = scmp.ne.s32.totalorder %s76, %s77
      %p89 = scmp.eq.s32.totalorder %s20, 1
      %p90 = por %p88, %p89
      %p92 = scmp.ne.s32.totalorder %s77, %s91
      %p93 = scmp.eq.s32.totalorder %s20, 0
      %p94 = por %p92, %p93
      %s96 = sadd.s32 %s95, 1
      %p99 = scmp.eq.s32.totalorder %s14, 1
      %p100 = scmp.ne.s32.totalorder %s95, %s97
      %p101 = scmp.eq.s32.totalorder %s14, 0
      %p102 = por %p100, %p101
      %p103 = scmp.ne.s32.totalorder %s95, %s97
      %p104 = scmp.eq.s32.totalorder %s19, 1
      %p105 = por %p103, %p104
      %p106 = scmp.ne.s32.totalorder %s97, %s98
      %p107 = scmp.eq.s32.totalorder %s19, 0
      %p108 = por %p106, %p107
      %p109 = scmp.ne.s32.totalorder %s97, %s98
      %p110 = scmp.eq.s32.totalorder %s20, 1
      %p111 = por %p109, %p110
      %p113 = scmp.ne.s32.totalorder %s98, %s112
      %p114 = scmp.eq.s32.totalorder %s20, 0
      %p115 = por %p113, %p114
      %s117 = sadd.s32 %s116, 1
      %p120 = scmp.eq.s32.totalorder %s14, 1
      %p121 = scmp.ne.s32.totalorder %s116, %s118
      %p122 = scmp.eq.s32.totalorder %s14, 0
      %p123 = por %p121, %p122
      %p124 = scmp.ne.s32.totalorder %s116, %s118
      %p125 = scmp.eq.s32.totalorder %s19, 1
      %p126 = por %p124, %p125
      %p127 = scmp.ne.s32.totalorder %s118, %s119
      %p128 = scmp.eq.s32.totalorder %s19, 0
      %p129 = por %p127, %p128
      %p130 = scmp.ne.s32.totalorder %s118, %s119
      %p131 = scmp.eq.s32.totalorder %s20, 1
      %p132 = por %p130, %p131
      %p134 = scmp.ne.s32.totalorder %s119, %s133
      %p135 = scmp.eq.s32.totalorder %s20, 0
      %p136 = por %p134, %p135
      %s137 = ssub.s32 %s14, %s21
      %p138 = scmp.eq.s32.totalorder %s137, 0
      %s140 = sadd.s32 %s139, 1
      %s141 = scalar_select %p138, %s139, %s140
      %p144 = pneg %p138
      %p145 = scmp.eq.s32.totalorder %s14, 1
      %p146 = por %p144, %p145
      %p147 = scmp.ne.s32.totalorder %s139, %s142
      %p148 = scmp.eq.s32.totalorder %s14, 0
      %p149 = por %p147, %p148
      %p150 = scmp.ne.s32.totalorder %s139, %s142
      %p151 = scmp.eq.s32.totalorder %s19, 1
      %p152 = por %p150, %p151
      %p153 = scmp.ne.s32.totalorder %s142, %s143
      %p154 = scmp.eq.s32.totalorder %s19, 0
      %p155 = por %p153, %p154
      %p156 = scmp.ne.s32.totalorder %s142, %s143
      %p157 = scmp.eq.s32.totalorder %s20, 1
      %p158 = por %p156, %p157
      %p160 = scmp.ne.s32.totalorder %s143, %s159
      %p161 = scmp.eq.s32.totalorder %s20, 0
      %p162 = por %p160, %p161
      %p163 = scmp.le.s32.totalorder 1, %s14
      %p164 = scmp.lt.s32.totalorder %s14, 3
      %p165 = pnand %p163, %p164
      %p166 = pneg %p165
      // Predicated region
      $region9: #{quant_bert_layer.1} parent=5 // pred_check
        _
      $region10: #{quant_bert_layer.1} parent=5 // pred_check_branch
        %168 = sbr.rel (%p165) target = $region12
      $region11: #{quant_bert_layer.1} parent=5 // pred_region
        %s169 = ssub.s32 %s14, 1
        // Predicated region
        $region13: #{quant_bert_layer.1} parent=11 // pred_check
          %p170 = pneg %p87
        $region14: #{quant_bert_layer.1} parent=11 // pred_check_branch
          %172 = sbr.rel (%p170) target = $region16
        $region15: #{quant_bert_layer.1} parent=11 // pred_region
          _
        $region16: #{quant_bert_layer.1} parent=11 // pred_fallthru
          _
        // Predicated region
        $region17: #{quant_bert_layer.1} parent=11 // pred_check
          %p173 = pneg %p108
        $region18: #{quant_bert_layer.1} parent=11 // pred_check_branch
          %175 = sbr.rel (%p173) target = $region20
        $region19: #{quant_bert_layer.1} parent=11 // pred_region
          _
        $region20: #{quant_bert_layer.1} parent=11 // pred_fallthru
          _
        // Predicated region
        $region21: #{quant_bert_layer.1} parent=11 // pred_check
          %p176 = pneg %p129
        $region22: #{quant_bert_layer.1} parent=11 // pred_check_branch
          %178 = sbr.rel (%p176) target = $region24
        $region23: #{quant_bert_layer.1} parent=11 // pred_region
          _
        $region24: #{quant_bert_layer.1} parent=11 // pred_fallthru
          _
      $region12: #{quant_bert_layer.1} parent=5 // pred_fallthru
        _
      %p179 = scmp.lt.s32.totalorder %s14, 2
      // Predicated region
      $region25: #{quant_bert_layer.1} parent=5 // pred_check
        %p180 = pneg %p179
      $region26: #{quant_bert_layer.1} parent=5 // pred_check_branch
        %182 = sbr.rel (%p180) target = $region28
      $region27: #{quant_bert_layer.1} parent=5 // pred_region
        // Predicated region
        $region29: #{quant_bert_layer.1} parent=27 // pred_check
          %p183 = pneg %p34
        $region30: #{quant_bert_layer.1} parent=27 // pred_check_branch
          %185 = sbr.rel (%p183) target = $region32
        $region31: #{quant_bert_layer.1} parent=27 // pred_region
          %p186 = scmp.lt.s32.totalorder %s14, 1
          %s187 = scalar_select %p186, %s14, 1
          %s188 = smul.addr %s187, 8
          %s189 = scalar_lea.vmem %s0, %s188
        $region32: #{quant_bert_layer.1} parent=27 // pred_fallthru
          _
        // Predicated region
        $region33: #{quant_bert_layer.1} parent=27 // pred_check
          %p190 = pneg %p60
        $region34: #{quant_bert_layer.1} parent=27 // pred_check_branch
          %192 = sbr.rel (%p190) target = $region36
        $region35: #{quant_bert_layer.1} parent=27 // pred_region
          %p193 = scmp.lt.s32.totalorder %s14, 1
          %s194 = scalar_select %p193, %s14, 1
          %s195 = smul.addr %s194, 4
          %s196 = smul.addr %s195, 8
          %s197 = scalar_lea.vmem %s1, %s196
        $region36: #{quant_bert_layer.1} parent=27 // pred_fallthru
          _
      $region28: #{quant_bert_layer.1} parent=5 // pred_fallthru
        _
      %p198 = scmp.le.s32.totalorder 1, %s14
      %p199 = scmp.lt.s32.totalorder %s14, 3
      %p200 = pnand %p198, %p199
      %p201 = pneg %p200
      // Predicated region
      $region37: #{quant_bert_layer.1} parent=5 // pred_check
        _
      $region38: #{quant_bert_layer.1} parent=5 // pred_check_branch
        %203 = sbr.rel (%p200) target = $region40
      $region39: #{quant_bert_layer.1} parent=5 // pred_region
        %s204 = ssub.s32 %s14, 1
        %p205 = scmp.lt.s32.totalorder %s19, 1
        %s206 = scalar_select %p205, %s19, 1
        %s207 = smul.addr %s206, 8
        %s208 = scalar_lea.vmem %s0, %s207
        %p209 = pneg %p40
        %p210 = pneg %p37
        %p211 = scmp.lt.s32.totalorder %s19, 1
        %s212 = scalar_select %p211, %s19, 1
        %s213 = smul.addr %s212, 4
        %s214 = smul.addr %s213, 8
        %s215 = scalar_lea.vmem %s1, %s214
        %p216 = pneg %p66
        %p217 = pneg %p63
        %p218 = pneg %p87
        %p219 = pneg %p84
        %p220 = pneg %p108
        %p221 = pneg %p105
        %p222 = pneg %p129
        %p223 = pneg %p126
        %p224 = pneg %p155
        %p225 = pneg %p152
        %s226 = sand.u32 %s142, 1
        %s227 = scalar_lea.sflag [#allocation3], %s226
        %s228 = sand.u32 %s142, 1
        %s229 = smul.addr %s228, 8
        %s230 = scalar_lea.vmem [#allocation2], %s229
        %p231 = scmp.lt.s32.totalorder %s19, 1
        %s232 = scalar_select %p231, %s19, 1
        %s233 = smul.addr %s232, 8
        %s234 = scalar_lea.vmem %s0, %s233
        %p235 = scmp.lt.s32.totalorder %s19, 1
        %s236 = scalar_select %p235, %s19, 1
        %s237 = smul.addr %s236, 4
        %s238 = smul.addr %s237, 8
        %s239 = scalar_lea.vmem %s1, %s238
        %v240 = vld [vmem:[%s234] sm:$0xff]
        %v241 = vld [vmem:[%s239] sm:$0xff]
        %v242 = vld [vmem:[%s239 + $0x8] sm:$0xff]
        %v243 = vld [vmem:[%s239 + $0x10] sm:$0xff]
        %v244 = vld [vmem:[%s239 + $0x18] sm:$0xff]
        %v245 = vld [vmem:[%s2] sm:$0xff]
        %v246 = vld [vmem:[%s2 + $0x18] sm:$0xff]
        %v247 = vld [vmem:[%s2 + $0x30] sm:$0xff]
        %v248 = vld [vmem:[%s2 + $0x48] sm:$0xff]
        %v249 = vld [vmem:[%s2 + $0x8] sm:$0xff]
        %v250 = vld [vmem:[%s2 + $0x20] sm:$0xff]
        %v251 = vld [vmem:[%s2 + $0x38] sm:$0xff]
        %v252 = vld [vmem:[%s2 + $0x50] sm:$0xff]
        %v253 = vld [vmem:[%s2 + $0x10] sm:$0xff]
        %v254 = vld [vmem:[%s2 + $0x28] sm:$0xff]
        %v255 = vld [vmem:[%s2 + $0x40] sm:$0xff]
        %v256 = vld [vmem:[%s2 + $0x58] sm:$0xff]
        %v257 = vld [vmem:[%s4] sm:$0x1]
        %v258 = vld [vmem:[%s4 + $0x1] sm:$0x1]
        %v259 = vld [vmem:[%s4 + $0x2] sm:$0x1]
        %v260 = vld [vmem:[%s4 + $0x3] sm:$0x1]
        %v261 = vld [vmem:[%s4 + $0x4] sm:$0x1]
        %v262 = vld [vmem:[%s4 + $0x5] sm:$0x1]
        %v263 = vld [vmem:[%s4 + $0x6] sm:$0x1]
        %v264 = vld [vmem:[%s4 + $0x7] sm:$0x1]
        %v265 = vlaneseq
        %v266 = vshrl.u32 %v265, 7
        %v267 = vsub.s32 0, %v266
        %v268 = vrot.slane %v257, %v267
        %vm269 = vcmask 261120
        %v271 = vsel %vm269, %v240, 0
        %273 = vmatprep.subr.mxu0 0.0
        %274 = vmatpush1.msra.mxu0 0.0
        %275 = vmatprep.subr.mxu0 0.0
        %276 = vmatpush1.msra.mxu0 0.0
        %277 = vmatprep.subr.mxu0 0.0
        %278 = vmatpush1.msra.mxu0 0.0
        %279 = vmatprep.subr.mxu0 0.0
        %280 = vmatpush1.msra.mxu0 0.0
        %281 = vmatprep.subr.mxu0 0.0
        %282 = vmatpush1.msra.mxu0 0.0
        %283 = vmatprep.subr.mxu0 0.0
        %284 = vmatpush1.msra.mxu0 0.0
        %285 = vmatprep.subr.mxu0 0.0
        %286 = vmatpush1.msra.mxu0 0.0
        %287 = vmatprep.subr.mxu0 0.0
        %288 = vmatpush1.msra.mxu0 0.0
        %289 = vmatprep.subr.mxu0 0.0
        %290 = vmatpush1.msra.mxu0 0.0
        %291 = vmatprep.subr.mxu0 0.0
        %292 = vmatpush1.msra.mxu0 0.0
        %293 = vmatprep.subr.mxu0 0.0
        %294 = vmatpush1.msra.mxu0 0.0
        %295 = vmatprep.subr.mxu0 0.0
        %296 = vmatpush1.msra.mxu0 0.0
        %297 = vmatprep.subr.mxu0 0.0
        %298 = vmatpush1.msra.mxu0 %v248
        %299 = vmatprep.subr.mxu0 0.0
        %300 = vmatpush1.msra.mxu0 %v247
        %301 = vmatprep.subr.mxu0 0.0
        %302 = vmatpush1.msra.mxu0 %v246
        %303 = vmatprep.subr.mxu0 0.0
        %304 = vmatpush1.msra.mxu0 %v245
        %305 = vmatprep.subr.mxu0 0.0
        %306 = vmatpush2.msra.mxu0 0.0
        %307 = vmatprep.subr.mxu0 0.0
        %308 = vmatpush2.msra.mxu0 0.0
        %309 = vmatprep.subr.mxu0 0.0
        %310 = vmatpush2.msra.mxu0 0.0
        %311 = vmatprep.subr.mxu0 0.0
        %312 = vmatpush2.msra.mxu0 0.0
        %313 = vmatprep.subr.mxu0 0.0
        %314 = vmatpush2.msra.mxu0 0.0
        %315 = vmatprep.subr.mxu0 0.0
        %316 = vmatpush2.msra.mxu0 0.0
        %317 = vmatprep.subr.mxu0 0.0
        %318 = vmatpush2.msra.mxu0 0.0
        %319 = vmatprep.subr.mxu0 0.0
        %320 = vmatpush2.msra.mxu0 0.0
        %321 = vmatprep.subr.mxu0 0.0
        %322 = vmatpush2.msra.mxu0 0.0
        %323 = vmatprep.subr.mxu0 0.0
        %324 = vmatpush2.msra.mxu0 0.0
        %325 = vmatprep.subr.mxu0 0.0
        %326 = vmatpush2.msra.mxu0 0.0
        %327 = vmatprep.subr.mxu0 0.0
        %328 = vmatpush2.msra.mxu0 0.0
        %329 = vmatprep.subr.mxu0 0.0
        %330 = vmatpush2.msra.mxu0 0.0
        %331 = vmatprep.subr.mxu0 0.0
        %332 = vmatpush2.msra.mxu0 0.0
        %333 = vmatprep.subr.mxu0 0.0
        %334 = vmatpush2.msra.mxu0 0.0
        %335 = vmatprep.subr.mxu0 0.0
        %336 = vmatpush2.msra.mxu0 0.0
        %337 = vmatprep.mubr.f32.mxu0 0.0
        %338 = vmatmul.mubr.f32.gmra.mxu0 %v271
        %v339 = vpop.f32.mrf.mxu0
        %v340 = vadd.f32 %v268, %v339
        %v341 = vpop.f32.mrf.mxu0
        %342 = vdwg.mxu0
        %344 = vrot.lane.b32.xlu0 %v340, 120
        %v345 = vpop.permute.xlu0 %344
        %346 = vrot.lane.b32.xlu0 %v340, 112
        %v347 = vpop.permute.xlu0 %346
        %348 = vrot.lane.b32.xlu0 %v340, 104
        %v349 = vpop.permute.xlu0 %348
        %350 = vrot.lane.b32.xlu0 %v340, 96
        %v351 = vpop.permute.xlu0 %350
        %352 = vrot.lane.b32.xlu0 %v345, 96
        %v353 = vpop.permute.xlu0 %352
        %354 = vrot.lane.b32.xlu0 %v347, 96
        %v355 = vpop.permute.xlu0 %354
        %356 = vrot.lane.b32.xlu0 %v349, 96
        %v357 = vpop.permute.xlu0 %356
        %vm358 = vcmask 64512
        %v359 = vsel %vm358, %v340, 0
        %v361 = vsel %vm358, %v345, 0
        %v363 = vsel %vm358, %v347, 0
        %v365 = vsel %vm358, %v349, 0
        %v367 = vsel %vm358, %v351, 0
        %v369 = vsel %vm358, %v353, 0
        %v371 = vsel %vm358, %v355, 0
        %v373 = vsel %vm358, %v357, 0
        %375 = vmatprep.subr.mxu0 0.0
        %376 = vmatpush1.xpose.msra.mxu0 0.0
        %377 = vmatprep.subr.mxu0 0.0
        %378 = vmatpush1.xpose.msra.mxu0 0.0
        %379 = vmatprep.subr.mxu0 0.0
        %380 = vmatpush1.xpose.msra.mxu0 0.0
        %381 = vmatprep.subr.mxu0 0.0
        %382 = vmatpush1.xpose.msra.mxu0 0.0
        %383 = vmatprep.subr.mxu0 0.0
        %384 = vmatpush1.xpose.msra.mxu0 0.0
        %385 = vmatprep.subr.mxu0 0.0
        %386 = vmatpush1.xpose.msra.mxu0 0.0
        %387 = vmatprep.subr.mxu0 0.0
        %388 = vmatpush1.xpose.msra.mxu0 0.0
        %389 = vmatprep.subr.mxu0 0.0
        %390 = vmatpush1.xpose.msra.mxu0 0.0
        %391 = vmatprep.subr.mxu0 0.0
        %392 = vmatpush1.xpose.msra.mxu0 0.0
        %393 = vmatprep.subr.mxu0 0.0
        %394 = vmatpush1.xpose.msra.mxu0 0.0
        %395 = vmatprep.subr.mxu0 0.0
        %396 = vmatpush1.xpose.msra.mxu0 0.0
        %397 = vmatprep.subr.mxu0 0.0
        %398 = vmatpush1.xpose.msra.mxu0 0.0
        %399 = vmatprep.subr.mxu0 0.0
        %400 = vmatpush1.xpose.msra.mxu0 %v373
        %401 = vmatprep.subr.mxu0 0.0
        %402 = vmatpush1.xpose.msra.mxu0 %v371
        %403 = vmatprep.subr.mxu0 0.0
        %404 = vmatpush1.xpose.msra.mxu0 %v369
        %405 = vmatprep.subr.mxu0 0.0
        %406 = vmatpush1.xpose.msra.mxu0 %v367
        %407 = vmatprep.subr.mxu0 0.0
        %408 = vmatpush2.xpose.msra.mxu0 0.0
        %409 = vmatprep.subr.mxu0 0.0
        %410 = vmatpush2.xpose.msra.mxu0 0.0
        %411 = vmatprep.subr.mxu0 0.0
        %412 = vmatpush2.xpose.msra.mxu0 0.0
        %413 = vmatprep.subr.mxu0 0.0
        %414 = vmatpush2.xpose.msra.mxu0 0.0
        %415 = vmatprep.subr.mxu0 0.0
        %416 = vmatpush2.xpose.msra.mxu0 0.0
        %417 = vmatprep.subr.mxu0 0.0
        %418 = vmatpush2.xpose.msra.mxu0 0.0
        %419 = vmatprep.subr.mxu0 0.0
        %420 = vmatpush2.xpose.msra.mxu0 0.0
        %421 = vmatprep.subr.mxu0 0.0
        %422 = vmatpush2.xpose.msra.mxu0 0.0
        %423 = vmatprep.subr.mxu0 0.0
        %424 = vmatpush2.xpose.msra.mxu0 0.0
        %425 = vmatprep.subr.mxu0 0.0
        %426 = vmatpush2.xpose.msra.mxu0 0.0
        %427 = vmatprep.subr.mxu0 0.0
        %428 = vmatpush2.xpose.msra.mxu0 0.0
        %429 = vmatprep.subr.mxu0 0.0
        %430 = vmatpush2.xpose.msra.mxu0 0.0
        %431 = vmatprep.subr.mxu0 0.0
        %432 = vmatpush2.xpose.msra.mxu0 0.0
        %433 = vmatprep.subr.mxu0 0.0
        %434 = vmatpush2.xpose.msra.mxu0 0.0
        %435 = vmatprep.subr.mxu0 0.0
        %436 = vmatpush2.xpose.msra.mxu0 0.0
        %437 = vmatprep.subr.mxu0 0.0
        %438 = vmatpush2.xpose.msra.mxu0 0.0
        %439 = vmatprep.mubr.f32.mxu0 0.0
        %440 = vmatmul.mubr.f32.gmra.mxu0 %v359
        %v441 = vpop.f32.mrf.mxu0
        %v442 = vadd.f32 0.0, %v441
        %v443 = vpop.f32.mrf.mxu0
        %444 = vmatprep.mubr.f32.mxu0 0.0
        %445 = vmatmul.mubr.f32.gmra.mxu0 %v361
        %v446 = vpop.f32.mrf.mxu0
        %v447 = vadd.f32 0.0, %v446
        %v448 = vpop.f32.mrf.mxu0
        %449 = vmatprep.mubr.f32.mxu0 0.0
        %450 = vmatmul.mubr.f32.gmra.mxu0 %v363
        %v451 = vpop.f32.mrf.mxu0
        %v452 = vadd.f32 0.0, %v451
        %v453 = vpop.f32.mrf.mxu0
        %454 = vmatprep.mubr.f32.mxu0 0.0
        %455 = vmatmul.mubr.f32.gmra.mxu0 %v365
        %v456 = vpop.f32.mrf.mxu0
        %v457 = vadd.f32 0.0, %v456
        %v458 = vpop.f32.mrf.mxu0
        %459 = vdwg.mxu0
        %v460 = vmul.f32 %v442, 0.35355338
        %v461 = vmul.f32 %v447, 0.35355338
        %v462 = vmul.f32 %v452, 0.35355338
        %v463 = vmul.f32 %v457, 0.35355338
        %v464 = vadd.f32 %v460, %v241
        %v465 = vadd.f32 %v461, %v242
        %v466 = vadd.f32 %v462, %v243
        %v467 = vadd.f32 %v463, %v244
        %v468 = vsel %vm269, %v464, -inf
        %469 = vmax.xlane.f32.xlu0 %v468
        %v470 = vpop.xlane.xlu0 %469
        %v471 = vsel %vm269, %v465, -inf
        %472 = vmax.xlane.f32.xlu0 %v471
        %v473 = vpop.xlane.xlu0 %472
        %v474 = vsel %vm269, %v466, -inf
        %475 = vmax.xlane.f32.xlu0 %v474
        %v476 = vpop.xlane.xlu0 %475
        %v477 = vsel %vm269, %v467, -inf
        %478 = vmax.xlane.f32.xlu0 %v477
        %v479 = vpop.xlane.xlu0 %478
        %v480 = vsub.f32 %v464, %v470
        %v481 = vsub.f32 %v465, %v473
        %v482 = vsub.f32 %v466, %v476
        %v483 = vsub.f32 %v467, %v479
        %v484 = vmul.f32 %v480, 1.442695
        %v485 = vpow.pop %v484
        %v486 = vmul.f32 %v481, 1.442695
        %v487 = vpow.pop %v486
        %v488 = vmul.f32 %v482, 1.442695
        %v489 = vpow.pop %v488
        %v490 = vmul.f32 %v483, 1.442695
        %v491 = vpow.pop %v490
        %v492 = vsel %vm269, %v485, 0.0
        %493 = vadd.xlane.f32.xlu0 %v492
        %v494 = vpop.xlane.xlu0 %493
        %v495 = vsel %vm269, %v487, 0.0
        %496 = vadd.xlane.f32.xlu0 %v495
        %v497 = vpop.xlane.xlu0 %496
        %v498 = vsel %vm269, %v489, 0.0
        %499 = vadd.xlane.f32.xlu0 %v498
        %v500 = vpop.xlane.xlu0 %499
        %v501 = vsel %vm269, %v491, 0.0
        %502 = vadd.xlane.f32.xlu0 %v501
        %v503 = vpop.xlane.xlu0 %502
        %v504 = vrcp.pop %v494
        %v505 = vrcp.pop %v497
        %v506 = vrcp.pop %v500
        %v507 = vrcp.pop %v503
        %v508 = vmul.f32 %v485, %v504
        %v509 = vmul.f32 %v487, %v505
        %v510 = vmul.f32 %v489, %v506
        %v511 = vmul.f32 %v491, %v507
        %512 = vrot.lane.b32.xlu0 %v340, 64
        %v513 = vpop.permute.xlu0 %512
        %514 = vrot.lane.b32.xlu0 %v345, 64
        %v515 = vpop.permute.xlu0 %514
        %516 = vrot.lane.b32.xlu0 %v347, 64
        %v517 = vpop.permute.xlu0 %516
        %518 = vrot.lane.b32.xlu0 %v349, 64
        %v519 = vpop.permute.xlu0 %518
        %v525 = vsel %vm269, %v508, 0
        %v528 = vsel %vm269, %v509, 0
        %v531 = vsel %vm269, %v510, 0
        %v534 = vsel %vm269, %v511, 0
        %536 = vmatprep.subr.mxu0 0.0
        %537 = vmatpush1.msra.mxu0 0.0
        %538 = vmatprep.subr.mxu0 0.0
        %539 = vmatpush1.msra.mxu0 0.0
        %540 = vmatprep.subr.mxu0 0.0
        %541 = vmatpush1.msra.mxu0 0.0
        %542 = vmatprep.subr.mxu0 0.0
        %543 = vmatpush1.msra.mxu0 0.0
        %544 = vmatprep.subr.mxu0 0.0
        %545 = vmatpush1.msra.mxu0 0.0
        %546 = vmatprep.subr.mxu0 0.0
        %547 = vmatpush1.msra.mxu0 0.0
        %548 = vmatprep.subr.mxu0 0.0
        %549 = vmatpush1.msra.mxu0 0.0
        %550 = vmatprep.subr.mxu0 0.0
        %551 = vmatpush1.msra.mxu0 0.0
        %552 = vmatprep.subr.mxu0 0.0
        %553 = vmatpush1.msra.mxu0 0.0
        %554 = vmatprep.subr.mxu0 0.0
        %555 = vmatpush1.msra.mxu0 0.0
        %556 = vmatprep.subr.mxu0 0.0
        %557 = vmatpush1.msra.mxu0 0.0
        %558 = vmatprep.subr.mxu0 0.0
        %559 = vmatpush1.msra.mxu0 0.0
        %560 = vmatprep.subr.mxu0 0.0
        %561 = vmatpush1.msra.mxu0 %v519
        %562 = vmatprep.subr.mxu0 0.0
        %563 = vmatpush1.msra.mxu0 %v517
        %564 = vmatprep.subr.mxu0 0.0
        %565 = vmatpush1.msra.mxu0 %v515
        %566 = vmatprep.subr.mxu0 0.0
        %567 = vmatpush1.msra.mxu0 %v513
        %568 = vmatprep.subr.mxu0 0.0
        %569 = vmatpush2.msra.mxu0 0.0
        %570 = vmatprep.subr.mxu0 0.0
        %571 = vmatpush2.msra.mxu0 0.0
        %572 = vmatprep.subr.mxu0 0.0
        %573 = vmatpush2.msra.mxu0 0.0
        %574 = vmatprep.subr.mxu0 0.0
        %575 = vmatpush2.msra.mxu0 0.0
        %576 = vmatprep.subr.mxu0 0.0
        %577 = vmatpush2.msra.mxu0 0.0
        %578 = vmatprep.subr.mxu0 0.0
        %579 = vmatpush2.msra.mxu0 0.0
        %580 = vmatprep.subr.mxu0 0.0
        %581 = vmatpush2.msra.mxu0 0.0
        %582 = vmatprep.subr.mxu0 0.0
        %583 = vmatpush2.msra.mxu0 0.0
        %584 = vmatprep.subr.mxu0 0.0
        %585 = vmatpush2.msra.mxu0 0.0
        %586 = vmatprep.subr.mxu0 0.0
        %587 = vmatpush2.msra.mxu0 0.0
        %588 = vmatprep.subr.mxu0 0.0
        %589 = vmatpush2.msra.mxu0 0.0
        %590 = vmatprep.subr.mxu0 0.0
        %591 = vmatpush2.msra.mxu0 0.0
        %592 = vmatprep.subr.mxu0 0.0
        %593 = vmatpush2.msra.mxu0 0.0
        %594 = vmatprep.subr.mxu0 0.0
        %595 = vmatpush2.msra.mxu0 0.0
        %596 = vmatprep.subr.mxu0 0.0
        %597 = vmatpush2.msra.mxu0 0.0
        %598 = vmatprep.subr.mxu0 0.0
        %599 = vmatpush2.msra.mxu0 0.0
        %600 = vmatprep.mubr.f32.mxu0 0.0
        %601 = vmatmul.mubr.f32.gmra.mxu0 %v525
        %v602 = vpop.f32.mrf.mxu0
        %v603 = vadd.f32 0.0, %v602
        %v604 = vpop.f32.mrf.mxu0
        %605 = vmatprep.mubr.f32.mxu0 0.0
        %606 = vmatmul.mubr.f32.gmra.mxu0 %v528
        %v607 = vpop.f32.mrf.mxu0
        %v608 = vadd.f32 0.0, %v607
        %v609 = vpop.f32.mrf.mxu0
        %610 = vmatprep.mubr.f32.mxu0 0.0
        %611 = vmatmul.mubr.f32.gmra.mxu0 %v531
        %v612 = vpop.f32.mrf.mxu0
        %v613 = vadd.f32 0.0, %v612
        %v614 = vpop.f32.mrf.mxu0
        %615 = vmatprep.mubr.f32.mxu0 0.0
        %616 = vmatmul.mubr.f32.gmra.mxu0 %v534
        %v617 = vpop.f32.mrf.mxu0
        %v618 = vadd.f32 0.0, %v617
        %v619 = vpop.f32.mrf.mxu0
        %620 = vdwg.mxu0
        %622 = vrot.lane.b32.xlu0 %v608, 8
        %v623 = vpop.permute.xlu0 %622
        %626 = vrot.lane.b32.xlu0 %v613, 16
        %v627 = vpop.permute.xlu0 %626
        %630 = vrot.lane.b32.xlu0 %v618, 24
        %v631 = vpop.permute.xlu0 %630
        %v633 = vsel %vm358, %v603, %v623
        %vm634 = vcmask 130048
        %v635 = vsel %vm634, %v633, %v627
        %vm636 = vcmask 195584
        %v637 = vsel %vm636, %v635, %v631
        %v638 = vlaneseq
        %v639 = vshrl.u32 %v638, 7
        %v640 = vsub.s32 0, %v639
        %v641 = vrot.slane %v258, %v640
        %v643 = vsel %vm269, %v637, 0
        %645 = vmatprep.subr.mxu0 0.0
        %646 = vmatpush1.msra.mxu0 0.0
        %647 = vmatprep.subr.mxu0 0.0
        %648 = vmatpush1.msra.mxu0 0.0
        %649 = vmatprep.subr.mxu0 0.0
        %650 = vmatpush1.msra.mxu0 0.0
        %651 = vmatprep.subr.mxu0 0.0
        %652 = vmatpush1.msra.mxu0 0.0
        %653 = vmatprep.subr.mxu0 0.0
        %654 = vmatpush1.msra.mxu0 0.0
        %655 = vmatprep.subr.mxu0 0.0
        %656 = vmatpush1.msra.mxu0 0.0
        %657 = vmatprep.subr.mxu0 0.0
        %658 = vmatpush1.msra.mxu0 0.0
        %659 = vmatprep.subr.mxu0 0.0
        %660 = vmatpush1.msra.mxu0 0.0
        %661 = vmatprep.subr.mxu0 0.0
        %662 = vmatpush1.msra.mxu0 0.0
        %663 = vmatprep.subr.mxu0 0.0
        %664 = vmatpush1.msra.mxu0 0.0
        %665 = vmatprep.subr.mxu0 0.0
        %666 = vmatpush1.msra.mxu0 0.0
        %667 = vmatprep.subr.mxu0 0.0
        %668 = vmatpush1.msra.mxu0 0.0
        %669 = vmatprep.subr.mxu0 0.0
        %670 = vmatpush1.msra.mxu0 %v252
        %671 = vmatprep.subr.mxu0 0.0
        %672 = vmatpush1.msra.mxu0 %v251
        %673 = vmatprep.subr.mxu0 0.0
        %674 = vmatpush1.msra.mxu0 %v250
        %675 = vmatprep.subr.mxu0 0.0
        %676 = vmatpush1.msra.mxu0 %v249
        %677 = vmatprep.subr.mxu0 0.0
        %678 = vmatpush2.msra.mxu0 0.0
        %679 = vmatprep.subr.mxu0 0.0
        %680 = vmatpush2.msra.mxu0 0.0
        %681 = vmatprep.subr.mxu0 0.0
        %682 = vmatpush2.msra.mxu0 0.0
        %683 = vmatprep.subr.mxu0 0.0
        %684 = vmatpush2.msra.mxu0 0.0
        %685 = vmatprep.subr.mxu0 0.0
        %686 = vmatpush2.msra.mxu0 0.0
        %687 = vmatprep.subr.mxu0 0.0
        %688 = vmatpush2.msra.mxu0 0.0
        %689 = vmatprep.subr.mxu0 0.0
        %690 = vmatpush2.msra.mxu0 0.0
        %691 = vmatprep.subr.mxu0 0.0
        %692 = vmatpush2.msra.mxu0 0.0
        %693 = vmatprep.subr.mxu0 0.0
        %694 = vmatpush2.msra.mxu0 0.0
        %695 = vmatprep.subr.mxu0 0.0
        %696 = vmatpush2.msra.mxu0 0.0
        %697 = vmatprep.subr.mxu0 0.0
        %698 = vmatpush2.msra.mxu0 0.0
        %699 = vmatprep.subr.mxu0 0.0
        %700 = vmatpush2.msra.mxu0 0.0
        %701 = vmatprep.subr.mxu0 0.0
        %702 = vmatpush2.msra.mxu0 0.0
        %703 = vmatprep.subr.mxu0 0.0
        %704 = vmatpush2.msra.mxu0 0.0
        %705 = vmatprep.subr.mxu0 0.0
        %706 = vmatpush2.msra.mxu0 0.0
        %707 = vmatprep.subr.mxu0 0.0
        %708 = vmatpush2.msra.mxu0 0.0
        %709 = vmatprep.mubr.f32.mxu0 0.0
        %710 = vmatmul.mubr.f32.gmra.mxu0 %v643
        %v711 = vpop.f32.mrf.mxu0
        %v712 = vadd.f32 %v641, %v711
        %v713 = vpop.f32.mrf.mxu0
        %714 = vdwg.mxu0
        %v715 = vadd.f32 %v712, %v240
        %v716 = vsel %vm269, %v715, 0.0
        %717 = vadd.xlane.f32.xlu0 %v716
        %v718 = vpop.xlane.xlu0 %717
        %v719 = vrcp.pop 32.0
        %v720 = vmul.f32 %v718, %v719
        %v721 = vsub.f32 %v715, %v720
        %v722 = vmul.f32 %v721, %v721
        %v723 = vsel %vm269, %v722, 0.0
        %724 = vadd.xlane.f32.xlu0 %v723
        %v725 = vpop.xlane.xlu0 %724
        %v726 = vmul.f32 %v725, %v719
        %v727 = vadd.f32 %v726, 1e-12
        %v728 = vrsqrt.pop %v727
        %v729 = vmul.f32 %v721, %v728
        %v730 = vlaneseq
        %v731 = vshrl.u32 %v730, 7
        %v732 = vsub.s32 0, %v731
        %v733 = vrot.slane %v259, %v732
        %v734 = vmul.f32 %v729, %v733
        %v735 = vlaneseq
        %v736 = vshrl.u32 %v735, 7
        %v737 = vsub.s32 0, %v736
        %v738 = vrot.slane %v260, %v737
        %v739 = vadd.f32 %v734, %v738
        %v740 = vlaneseq
        %v741 = vshrl.u32 %v740, 7
        %v742 = vsub.s32 0, %v741
        %v743 = vrot.slane %v261, %v742
        %v745 = vsel %vm269, %v739, 0
        %747 = vmatprep.subr.mxu0 0.0
        %748 = vmatpush1.msra.mxu0 0.0
        %749 = vmatprep.subr.mxu0 0.0
        %750 = vmatpush1.msra.mxu0 0.0
        %751 = vmatprep.subr.mxu0 0.0
        %752 = vmatpush1.msra.mxu0 0.0
        %753 = vmatprep.subr.mxu0 0.0
        %754 = vmatpush1.msra.mxu0 0.0
        %755 = vmatprep.subr.mxu0 0.0
        %756 = vmatpush1.msra.mxu0 0.0
        %757 = vmatprep.subr.mxu0 0.0
        %758 = vmatpush1.msra.mxu0 0.0
        %759 = vmatprep.subr.mxu0 0.0
        %760 = vmatpush1.msra.mxu0 0.0
        %761 = vmatprep.subr.mxu0 0.0
        %762 = vmatpush1.msra.mxu0 0.0
        %763 = vmatprep.subr.mxu0 0.0
        %764 = vmatpush1.msra.mxu0 0.0
        %765 = vmatprep.subr.mxu0 0.0
        %766 = vmatpush1.msra.mxu0 0.0
        %767 = vmatprep.subr.mxu0 0.0
        %768 = vmatpush1.msra.mxu0 0.0
        %769 = vmatprep.subr.mxu0 0.0
        %770 = vmatpush1.msra.mxu0 0.0
        %771 = vmatprep.subr.mxu0 0.0
        %772 = vmatpush1.msra.mxu0 %v256
        %773 = vmatprep.subr.mxu0 0.0
        %774 = vmatpush1.msra.mxu0 %v255
        %775 = vmatprep.subr.mxu0 0.0
        %776 = vmatpush1.msra.mxu0 %v254
        %777 = vmatprep.subr.mxu0 0.0
        %778 = vmatpush1.msra.mxu0 %v253
        %779 = vmatprep.subr.mxu0 0.0
        %780 = vmatpush2.msra.mxu0 0.0
        %781 = vmatprep.subr.mxu0 0.0
        %782 = vmatpush2.msra.mxu0 0.0
        %783 = vmatprep.subr.mxu0 0.0
        %784 = vmatpush2.msra.mxu0 0.0
        %785 = vmatprep.subr.mxu0 0.0
        %786 = vmatpush2.msra.mxu0 0.0
        %787 = vmatprep.subr.mxu0 0.0
        %788 = vmatpush2.msra.mxu0 0.0
        %789 = vmatprep.subr.mxu0 0.0
        %790 = vmatpush2.msra.mxu0 0.0
        %791 = vmatprep.subr.mxu0 0.0
        %792 = vmatpush2.msra.mxu0 0.0
        %793 = vmatprep.subr.mxu0 0.0
        %794 = vmatpush2.msra.mxu0 0.0
        %795 = vmatprep.subr.mxu0 0.0
        %796 = vmatpush2.msra.mxu0 0.0
        %797 = vmatprep.subr.mxu0 0.0
        %798 = vmatpush2.msra.mxu0 0.0
        %799 = vmatprep.subr.mxu0 0.0
        %800 = vmatpush2.msra.mxu0 0.0
        %801 = vmatprep.subr.mxu0 0.0
        %802 = vmatpush2.msra.mxu0 0.0
        %803 = vmatprep.subr.mxu0 0.0
        %804 = vmatpush2.msra.mxu0 0.0
        %805 = vmatprep.subr.mxu0 0.0
        %806 = vmatpush2.msra.mxu0 0.0
        %807 = vmatprep.subr.mxu0 0.0
        %808 = vmatpush2.msra.mxu0 0.0
        %809 = vmatprep.subr.mxu0 0.0
        %810 = vmatpush2.msra.mxu0 0.0
        %811 = vmatprep.mubr.f32.mxu0 0.0
        %812 = vmatmul.mubr.f32.gmra.mxu0 %v745
        %v813 = vpop.f32.mrf.mxu0
        %v814 = vadd.f32 %v743, %v813
        %v815 = vpop.f32.mrf.mxu0
        %816 = vdwg.mxu0
        %v817 = vmul.f32 %v814, 0.5
        %v818 = vmul.f32 %v814, 0.70710677
        %v819 = verf.f32.pop %v818
        %v820 = vadd.f32 %v819, 1.0
        %v821 = vmul.f32 %v817, %v820
        %v822 = vld [vmem:[%s3] sm:$0xff]
        %v823 = vld [vmem:[%s3 + $0x8] sm:$0xff]
        %v824 = vld [vmem:[%s3 + $0x10] sm:$0xff]
        %v825 = vld [vmem:[%s3 + $0x18] sm:$0xff]
        %v826 = vld [vmem:[%s3 + $0x20] sm:$0xff]
        %v827 = vld [vmem:[%s3 + $0x28] sm:$0xff]
        %v828 = vld [vmem:[%s3 + $0x30] sm:$0xff]
        %v829 = vld [vmem:[%s3 + $0x38] sm:$0xff]
        %v830 = vld [vmem:[%s3 + $0x40] sm:$0xff]
        %v831 = vld [vmem:[%s3 + $0x48] sm:$0xff]
        %v832 = vld [vmem:[%s3 + $0x50] sm:$0xff]
        %v833 = vld [vmem:[%s3 + $0x58] sm:$0xff]
        %v834 = vld [vmem:[%s3 + $0x60] sm:$0xff]
        %v835 = vld [vmem:[%s3 + $0x68] sm:$0xff]
        %v836 = vld [vmem:[%s3 + $0x70] sm:$0xff]
        %v837 = vld [vmem:[%s3 + $0x78] sm:$0xff]
        %v838 = vlaneseq
        %v839 = vshrl.u32 %v838, 7
        %v840 = vsub.s32 0, %v839
        %v841 = vrot.slane %v262, %v840
        %842 = vmatprep.subr.mxu0 0.0
        %843 = vmatpush1.msra.mxu0 %v837
        %844 = vmatprep.subr.mxu0 0.0
        %845 = vmatpush1.msra.mxu0 %v836
        %846 = vmatprep.subr.mxu0 0.0
        %847 = vmatpush1.msra.mxu0 %v835
        %848 = vmatprep.subr.mxu0 0.0
        %849 = vmatpush1.msra.mxu0 %v834
        %850 = vmatprep.subr.mxu0 0.0
        %851 = vmatpush1.msra.mxu0 %v833
        %852 = vmatprep.subr.mxu0 0.0
        %853 = vmatpush1.msra.mxu0 %v832
        %854 = vmatprep.subr.mxu0 0.0
        %855 = vmatpush1.msra.mxu0 %v831
        %856 = vmatprep.subr.mxu0 0.0
        %857 = vmatpush1.msra.mxu0 %v830
        %858 = vmatprep.subr.mxu0 0.0
        %859 = vmatpush1.msra.mxu0 %v829
        %860 = vmatprep.subr.mxu0 0.0
        %861 = vmatpush1.msra.mxu0 %v828
        %862 = vmatprep.subr.mxu0 0.0
        %863 = vmatpush1.msra.mxu0 %v827
        %864 = vmatprep.subr.mxu0 0.0
        %865 = vmatpush1.msra.mxu0 %v826
        %866 = vmatprep.subr.mxu0 0.0
        %867 = vmatpush1.msra.mxu0 %v825
        %868 = vmatprep.subr.mxu0 0.0
        %869 = vmatpush1.msra.mxu0 %v824
        %870 = vmatprep.subr.mxu0 0.0
        %871 = vmatpush1.msra.mxu0 %v823
        %872 = vmatprep.subr.mxu0 0.0
        %873 = vmatpush1.msra.mxu0 %v822
        %874 = vmatprep.subr.mxu0 0.0
        %875 = vmatpush2.msra.mxu0 0.0
        %876 = vmatprep.subr.mxu0 0.0
        %877 = vmatpush2.msra.mxu0 0.0
        %878 = vmatprep.subr.mxu0 0.0
        %879 = vmatpush2.msra.mxu0 0.0
        %880 = vmatprep.subr.mxu0 0.0
        %881 = vmatpush2.msra.mxu0 0.0
        %882 = vmatprep.subr.mxu0 0.0
        %883 = vmatpush2.msra.mxu0 0.0
        %884 = vmatprep.subr.mxu0 0.0
        %885 = vmatpush2.msra.mxu0 0.0
        %886 = vmatprep.subr.mxu0 0.0
        %887 = vmatpush2.msra.mxu0 0.0
        %888 = vmatprep.subr.mxu0 0.0
        %889 = vmatpush2.msra.mxu0 0.0
        %890 = vmatprep.subr.mxu0 0.0
        %891 = vmatpush2.msra.mxu0 0.0
        %892 = vmatprep.subr.mxu0 0.0
        %893 = vmatpush2.msra.mxu0 0.0
        %894 = vmatprep.subr.mxu0 0.0
        %895 = vmatpush2.msra.mxu0 0.0
        %896 = vmatprep.subr.mxu0 0.0
        %897 = vmatpush2.msra.mxu0 0.0
        %898 = vmatprep.subr.mxu0 0.0
        %899 = vmatpush2.msra.mxu0 0.0
        %900 = vmatprep.subr.mxu0 0.0
        %901 = vmatpush2.msra.mxu0 0.0
        %902 = vmatprep.subr.mxu0 0.0
        %903 = vmatpush2.msra.mxu0 0.0
        %904 = vmatprep.subr.mxu0 0.0
        %905 = vmatpush2.msra.mxu0 0.0
        %906 = vmatprep.mubr.f32.mxu0 0.0
        %907 = vmatmul.mubr.f32.gmra.mxu0 %v821
        %v908 = vpop.f32.mrf.mxu0
        %v909 = vadd.f32 %v841, %v908
        %v910 = vpop.f32.mrf.mxu0
        %911 = vdwg.mxu0
        %v912 = vadd.f32 %v909, %v739
        %v913 = vsel %vm269, %v912, 0.0
        %914 = vadd.xlane.f32.xlu0 %v913
        %v915 = vpop.xlane.xlu0 %914
        %v916 = vmul.f32 %v915, %v719
        %v917 = vsub.f32 %v912, %v916
        %v918 = vmul.f32 %v917, %v917
        %v919 = vsel %vm269, %v918, 0.0
        %920 = vadd.xlane.f32.xlu0 %v919
        %v921 = vpop.xlane.xlu0 %920
        %v922 = vmul.f32 %v921, %v719
        %v923 = vadd.f32 %v922, 1e-12
        %v924 = vrsqrt.pop %v923
        %v925 = vmul.f32 %v917, %v924
        %v926 = vlaneseq
        %v927 = vshrl.u32 %v926, 7
        %v928 = vsub.s32 0, %v927
        %v929 = vrot.slane %v263, %v928
        %v930 = vmul.f32 %v925, %v929
        %v931 = vlaneseq
        %v932 = vshrl.u32 %v931, 7
        %v933 = vsub.s32 0, %v932
        %v934 = vrot.slane %v264, %v933
        %v935 = vadd.f32 %v930, %v934
        %936 = vst.msk [vmem:[%s230] sm:$0xff] %vm269, %v935
        %s937 = sand.u32 %s142, 1
        %s938 = scalar_lea.sflag [#allocation3], %s937
        %s939 = sand.u32 %s142, 1
        %s940 = smul.addr %s939, 8
        %s941 = scalar_lea.vmem [#allocation2], %s940
        // Predicated region
        $region41: #{quant_bert_layer.1} parent=39 // pred_check
          %p942 = pneg %p152
        $region42: #{quant_bert_layer.1} parent=39 // pred_check_branch
          %944 = sbr.rel (%p942) target = $region44
        $region43: #{quant_bert_layer.1} parent=39 // pred_region
          %s946 = ssub.s32 128, 128
          %947 = vsyncadd %s938, %s946
          %s948 = smul.addr %s19, 128
          %s949 = scalar_lea.hbm %s5, %s948
          %s951 = sshll.u32 %s941, 4
          %s952 = int_to_ptr.vmem [resolvable:$true] %s951
          %954 = dma.vmem_to_hbm [thread:$0]  %s952, 128, %s949, %s938
        $region44: #{quant_bert_layer.1} parent=39 // pred_fallthru
          _
      $region40: #{quant_bert_layer.1} parent=5 // pred_fallthru
        _
      %p955 = scmp.le.s32.totalorder 2, %s14
      // Predicated region
      $region45: #{quant_bert_layer.1} parent=5 // pred_check
        %p956 = pneg %p955
      $region46: #{quant_bert_layer.1} parent=5 // pred_check_branch
        %958 = sbr.rel (%p956) target = $region48
      $region47: #{quant_bert_layer.1} parent=5 // pred_region
        %s959 = ssub.s32 %s14, 2
        // Predicated region
        $region49: #{quant_bert_layer.1} parent=47 // pred_check
          %p960 = pneg %p158
        $region50: #{quant_bert_layer.1} parent=47 // pred_check_branch
          %962 = sbr.rel (%p960) target = $region52
        $region51: #{quant_bert_layer.1} parent=47 // pred_region
          %s963 = sand.u32 %s143, 1
          %s964 = scalar_lea.sflag [#allocation3], %s963
          %s965 = sand.u32 %s143, 1
          %s966 = smul.addr %s965, 8
          %s967 = scalar_lea.vmem [#allocation2], %s966
          %968 = dma.done %s964, 128
        $region52: #{quant_bert_layer.1} parent=47 // pred_fallthru
          _
      $region48: #{quant_bert_layer.1} parent=5 // pred_fallthru
        _
    $region6: #{quant_bert_layer.1} parent=1 // loop_footer
      %s18 = sadd.s32 1, %s14
    $region7: #{quant_bert_layer.1} parent=1 // loop_footer_branch
      %13 = sbr.rel target = $region3
    $region8: #{quant_bert_layer.1} parent=1 // loop_exit
      _
    %969 = vsyncpa [#allocation3], 1
    %s970 = scalar_lea.sflag [#allocation3], 1
    %971 = vsyncpa %s970, 1

</llo_original>
